<compile_context>
chip_gen: v6e
topology: v6e:2x2x1
jax: 0.10.0
libtpu: 0.0.40
codegen_flags: <defaults>
</compile_context>

<pallas_src>
import functools

import jax
import jax.numpy as jnp
from jax import lax
from jax.experimental import pallas as pl
from jax.experimental.pallas import tpu as pltpu

EPS = 1e-5  # PyTorch nn.LayerNorm default

TILE_TARGET_BYTES = 4 << 20  # ~4 MiB input tiles: amortizes the ~0.35 us/step
                             # overhead to <10% even at v7x's 3.2 TB/s HBM.


def _prenorm_ln_kernel(x_ref, gb_ref, o_ref, *, n, io_dtype_tail):
    # x_ref : (TB, D) lane-dense block of flattened batch rows.
    # gb_ref: (2, D)  packed [gamma; beta] (flattened affine params).
    # n     : true number of normalized elements per row = C*H*W (static).
    xf = x_ref[...].astype(jnp.float32)
    inv_n = jnp.float32(1.0 / n)

    # Fused single-pass reduction: sum and sum-of-squares, f32 accumulation.
    s = jnp.sum(xf, axis=-1, keepdims=True)
    s2 = jnp.sum(xf * xf, axis=-1, keepdims=True)
    mean = s * inv_n
    var = jnp.maximum(s2 * inv_n - mean * mean, 0.0)  # guard f32 cancellation
    inv = lax.rsqrt(var + EPS)  # EUP

    if io_dtype_tail:
        # bf16 elementwise tail (v6e/v7x): stats in f32, normalize+affine in I/O dtype.
        dt = o_ref.dtype
        y = (x_ref[...] - mean.astype(dt)) * inv.astype(dt)
        o_ref[...] = y * gb_ref[0:1, :] + gb_ref[1:2, :]
    else:
        g = gb_ref[0:1, :].astype(jnp.float32)
        b = gb_ref[1:2, :].astype(jnp.float32)
        y = (xf - mean) * inv * g + b
        o_ref[...] = y.astype(o_ref.dtype)


def prenorm_layernorm(x, gamma, beta):
    """LayerNorm([C, H, W]) over NCHW input, computed in a Pallas TPU kernel."""
    B, C, H, W = x.shape
    assert gamma.shape == (C, H, W) and beta.shape == (C, H, W)
    D = C * H * W

    # Flatten: free reshapes (contiguous), no extra HBM passes.
    x2 = x.reshape(B, D)
    gb = jnp.stack([gamma.reshape(D), beta.reshape(D)], axis=0)  # (2, D)

    itemsize = jnp.dtype(x.dtype).itemsize
    row_bytes = D * itemsize

    # Batch-block size: target ~4 MiB input tiles; keep >= 2 grid steps when the
    # batch is big enough so the "parallel" axis shards across v7x's two TCs.
    tb_target = max(1, TILE_TARGET_BYTES // max(1, row_bytes))
    if tb_target >= B:
        if B > 8:
            TB = max(8, (pl.cdiv(B, 2) // 8) * 8)  # ~half batch, multiple of 8
        else:
            TB = B                                  # tiny batch: one full block
    else:
        TB = max(8, (tb_target // 8) * 8)
    # NOTE: if a single 8-row tile would exceed VMEM (enormous D), the D axis
    # would also need tiling; not needed for these shapes.

    grid = (pl.cdiv(B, TB),)

    # VMEM budget: 2x in + 2x out double buffers + ~3 tile-sized f32 temporaries
    # (xf, xf*xf, y).  Clamp to 48 MiB (< v7x's 64 MiB physical per TC).
    tile_io_bytes = TB * D * itemsize
    tile_f32_bytes = TB * D * 4
    vmem_budget = 4 * tile_io_bytes + 3 * tile_f32_bytes + (1 << 20)
    vmem_limit = int(min(48 << 20, max(16 << 20, vmem_budget)))

    io_dtype_tail = (x.dtype == jnp.bfloat16)

    out = pl.pallas_call(
        functools.partial(_prenorm_ln_kernel, n=D, io_dtype_tail=io_dtype_tail),
        out_shape=jax.ShapeDtypeStruct((B, D), x.dtype),
        grid_spec=pltpu.PrefetchScalarGridSpec(
            num_scalar_prefetch=0,
            grid=grid,
            in_specs=[
                pl.BlockSpec((TB, D), lambda i: (i, 0)),   # x rows
                pl.BlockSpec((2, D), lambda i: (0, 0)),    # packed gamma/beta
            ],
            out_specs=pl.BlockSpec((TB, D), lambda i: (i, 0)),
        ),
        compiler_params=pltpu.CompilerParams(
            dimension_semantics=("parallel",),   # batch-block axis: megacore on v7x
            vmem_limit_bytes=vmem_limit,
        ),
    )(x2, gb)

    return out.reshape(B, C, H, W)


def prenorm_apply(x, gamma, beta, fn, **kwargs):
    """Equivalent of PreNorm.forward: fn(LayerNorm(x), **kwargs)."""
    return fn(prenorm_layernorm(x, gamma, beta), **kwargs)


if __name__ == "__main__":
    # Small shapes consistent with the module: dim=4 channels, numb_patch=16.
    B, C, H, W = 2, 4, 16, 16

    key = jax.random.PRNGKey(0)
    kx, kg, kb = jax.random.split(key, 3)
    x = jax.random.normal(kx, (B, C, H, W), dtype=jnp.float32)
    # PyTorch inits gamma=1, beta=0; perturb deterministically to exercise affine.
    gamma = 1.0 + 0.1 * jax.random.normal(kg, (C, H, W), dtype=jnp.float32)
    beta = 0.1 * jax.random.normal(kb, (C, H, W), dtype=jnp.float32)

    fn = lambda t: t  # wrapped `fn` is an arbitrary user callable; identity here

    out = prenorm_apply(x, gamma, beta, fn)
    out = jax.block_until_ready(out)

    # Pure-JAX reference for correctness.
    xf = x.astype(jnp.float32)
    mean = jnp.mean(xf, axis=(1, 2, 3), keepdims=True)
    var = jnp.mean((xf - mean) ** 2, axis=(1, 2, 3), keepdims=True)
    ref = (xf - mean) * lax.rsqrt(var + EPS) * gamma[None] + beta[None]
    assert jnp.allclose(out, ref, atol=1e-5, rtol=1e-5), "mismatch vs reference"

    print("KERNEL_OK")
</pallas_src>

<mosaic_0001>
module attributes {stable_mosaic.version = 11 : i64} {
  func.func @_prenorm_ln_kernel(%arg0: i32, %arg1: memref<2x1024xf32, #tpu.memory_space<vmem>>, %arg2: memref<2x1024xf32, #tpu.memory_space<vmem>>, %arg3: memref<2x1024xf32, #tpu.memory_space<vmem>>) attributes {dimension_semantics = [#tpu.dimension_semantics<parallel>], iteration_bounds = array<i64: 1>, scalar_prefetch = 0 : i64, scratch_operands = 0 : i64, tpu.core_type = #tpu.core_type<tc>, window_params = [{transform_indices = @transform_0, window_bounds = array<i64: 2, 1024>}, {pipeline_mode = #tpu.pipeline_mode<synchronous>, transform_indices = @transform_1, window_bounds = array<i64: 2, 1024>}, {transform_indices = @transform_2, window_bounds = array<i64: 2, 1024>}]} {
    %c0 = arith.constant 0 : index
    %c0_0 = arith.constant 0 : index
    %0 = vector.load %arg1[%c0, %c0_0] : memref<2x1024xf32, #tpu.memory_space<vmem>>, vector<2x1024xf32>
    %cst = arith.constant dense<0.000000e+00> : vector<2xf32>
    %1 = vector.multi_reduction <add>, %0, %cst [1] : vector<2x1024xf32> to vector<2xf32>
    %2 = vector.shape_cast %1 : vector<2xf32> to vector<2x1xf32>
    %3 = arith.mulf %0, %0 : vector<2x1024xf32>
    %cst_1 = arith.constant dense<0.000000e+00> : vector<2xf32>
    %4 = vector.multi_reduction <add>, %3, %cst_1 [1] : vector<2x1024xf32> to vector<2xf32>
    %5 = vector.shape_cast %4 : vector<2xf32> to vector<2x1xf32>
    %cst_2 = arith.constant 9.765625E-4 : f32
    %6 = vector.broadcast %cst_2 : f32 to vector<2x1xf32>
    %7 = arith.mulf %2, %6 : vector<2x1xf32>
    %cst_3 = arith.constant 9.765625E-4 : f32
    %8 = vector.broadcast %cst_3 : f32 to vector<2x1xf32>
    %9 = arith.mulf %5, %8 : vector<2x1xf32>
    %10 = arith.mulf %7, %7 : vector<2x1xf32>
    %11 = arith.subf %9, %10 : vector<2x1xf32>
    %cst_4 = arith.constant 0.000000e+00 : f32
    %12 = vector.broadcast %cst_4 : f32 to vector<2x1xf32>
    %13 = arith.maximumf %11, %12 : vector<2x1xf32>
    %cst_5 = arith.constant 9.99999974E-6 : f32
    %14 = vector.broadcast %cst_5 : f32 to vector<2x1xf32>
    %15 = arith.addf %13, %14 : vector<2x1xf32>
    %16 = math.rsqrt %15 : vector<2x1xf32>
    %c0_6 = arith.constant 0 : index
    %c0_7 = arith.constant 0 : index
    %17 = vector.load %arg2[%c0_6, %c0_7] : memref<2x1024xf32, #tpu.memory_space<vmem>>, vector<1x1024xf32>
    %c1 = arith.constant 1 : index
    %c0_8 = arith.constant 0 : index
    %18 = vector.load %arg2[%c1, %c0_8] : memref<2x1024xf32, #tpu.memory_space<vmem>>, vector<1x1024xf32>
    %19 = vector.broadcast %7 : vector<2x1xf32> to vector<2x1024xf32>
    %20 = arith.subf %0, %19 : vector<2x1024xf32>
    %21 = vector.broadcast %16 : vector<2x1xf32> to vector<2x1024xf32>
    %22 = arith.mulf %20, %21 : vector<2x1024xf32>
    %23 = vector.broadcast %17 : vector<1x1024xf32> to vector<2x1024xf32>
    %24 = arith.mulf %22, %23 : vector<2x1024xf32>
    %25 = vector.broadcast %18 : vector<1x1024xf32> to vector<2x1024xf32>
    %26 = arith.addf %24, %25 : vector<2x1024xf32>
    %c0_9 = arith.constant 0 : index
    %c0_10 = arith.constant 0 : index
    %27 = vector.load %arg3[%c0_9, %c0_10] : memref<2x1024xf32, #tpu.memory_space<vmem>>, vector<2x1024xf32>
    tpu.vector_store %arg3[%c0_9, %c0_10], %26 {strides = array<i32>} : memref<2x1024xf32, #tpu.memory_space<vmem>>, vector<2x1024xf32>,
    return
  }
  func.func @transform_0(%arg0: i32) -> (i32, i32) {
    %c0_i32 = arith.constant 0 : i32
    %c0_i32_0 = arith.constant 0 : i32
    return %arg0, %c0_i32 : i32, i32
  }
  func.func @transform_1(%arg0: i32) -> (i32, i32) {
    %c0_i32 = arith.constant 0 : i32
    %c0_i32_0 = arith.constant 0 : i32
    %c0_i32_1 = arith.constant 0 : i32
    return %c0_i32, %c0_i32_0 : i32, i32
  }
  func.func @transform_2(%arg0: i32) -> (i32, i32) {
    %c0_i32 = arith.constant 0 : i32
    %c0_i32_0 = arith.constant 0 : i32
    return %arg0, %c0_i32 : i32, i32
  }
}

</mosaic_0001>

<llo_original>
// kernel: tpu_custom_call.1
$region0: #{tpu_custom_call.1}
  #allocation0 [shape = 'u32[]', space=smem, size = 0x4, offset = 0x4, fixed_abs, tag = 'smem constant byte address 0x4 - core index']
  #allocation1 [shape = 'u32[144,128]{1,0:T(1,128)}', space=vmem, size = 0x12000, scoped, tag = 'internal scratch']
  %s0 = inlined_call_operand.hbm [shape: f32[2,1024], index: 0, kind: input, shape index: {}]
  %s1 = inlined_call_operand.hbm [shape: f32[2,1024], index: 1, kind: input, shape index: {}]
  %s2 = inlined_call_operand.hbm [shape: f32[2,1024], index: 2, kind: output, shape index: {}]
  %s3 = sld [smem:[#allocation0]]
  $region26: #{tpu_custom_call.1} parent=0
    _
  %s5 = ssub.s32 1, %s3
  %s6 = scalar_select 0, %s5, %s3
  $region1: #{tpu_custom_call.1} parent=0
    #allocation2 [shape = 'u8[8192]{0}', space=vmem, size = 0x2000, scoped, tag = 'input window, operand 0, single buffered']
    #allocation3 [shape = 's32[1]{0}', space=sflag, size = 0x4, scoped, tag = 'scoped memory for tpu_custom_call.1']
    #allocation4 [shape = 's32[1]{0}', space=sflag, size = 0x4, scoped, tag = 'scoped memory for tpu_custom_call.1']
    #allocation5 [shape = 'u8[8192]{0}', space=vmem, size = 0x2000, scoped, tag = 'input window, operand 1, single buffered']
    #allocation6 [shape = 's32[1]{0}', space=sflag, size = 0x4, scoped, tag = 'scoped memory for tpu_custom_call.1']
    #allocation7 [shape = 'u8[8192]{0}', space=vmem, size = 0x2000, scoped, tag = 'output window, operand 0, single buffered']
    %7 = vsyncpa [#allocation3], 0
    %8 = vsyncpa [#allocation6], 0
    %9 = vsyncpa [#allocation4], 0
    // Predicated region
    $region2: #{tpu_custom_call.1} parent=1 // pred_check
      _
    $region3: #{tpu_custom_call.1} parent=1 // pred_check_branch
      %11 = sbr.rel (0) target = $region5
    $region4: #{tpu_custom_call.1} parent=1 // pred_region
      %s13 = ssub.s32 256, 256
      %14 = vsyncadd [#allocation3], %s13
      %s16 = sshll.u32 [#allocation2], 4
      %s17 = int_to_ptr.vmem [resolvable:$true] %s16
      %19 = dma.hbm_to_vmem [thread:$0]  %s0, 256, %s17, [#allocation3]
    $region5: #{tpu_custom_call.1} parent=1 // pred_fallthru
      _
    // Predicated region
    $region6: #{tpu_custom_call.1} parent=1 // pred_check
      _
    $region7: #{tpu_custom_call.1} parent=1 // pred_check_branch
      %21 = sbr.rel (0) target = $region9
    $region8: #{tpu_custom_call.1} parent=1 // pred_region
      %s23 = ssub.s32 256, 256
      %24 = vsyncadd [#allocation6], %s23
      %s26 = sshll.u32 [#allocation5], 4
      %s27 = int_to_ptr.vmem [resolvable:$true] %s26
      %29 = dma.hbm_to_vmem [thread:$0]  %s1, 256, %s27, [#allocation6]
    $region9: #{tpu_custom_call.1} parent=1 // pred_fallthru
      _
    // Predicated region
    $region10: #{tpu_custom_call.1} parent=1 // pred_check
      _
    $region11: #{tpu_custom_call.1} parent=1 // pred_check_branch
      %31 = sbr.rel (0) target = $region13
    $region12: #{tpu_custom_call.1} parent=1 // pred_region
      %32 = dma.done [#allocation3], 256
    $region13: #{tpu_custom_call.1} parent=1 // pred_fallthru
      _
    // Predicated region
    $region14: #{tpu_custom_call.1} parent=1 // pred_check
      _
    $region15: #{tpu_custom_call.1} parent=1 // pred_check_branch
      %34 = sbr.rel (0) target = $region17
    $region16: #{tpu_custom_call.1} parent=1 // pred_region
      %35 = dma.done [#allocation6], 256
    $region17: #{tpu_custom_call.1} parent=1 // pred_fallthru
      _
    %v36 = vld [vmem:[#allocation2] sm:$0xff]
    %v37 = vld [vmem:[#allocation2 + $0x8] sm:$0xff]
    %v40 = vcombine.high %v36, %v36
    %v42 = vunpack.c.l.s4 1983009808
    %v43 = vunpack.c.0.s8 %v42
    %v44 = vlaneseq
    %v45 = vshrl.u32 %v44, 7
    %v46 = vsub.s32 %v43, %v45
    %v47 = vrot.slane %v36, %v46
    %v49 = vunpack.c.l.s4 1983009808
    %v50 = vunpack.c.0.s8 %v49
    %v51 = vlaneseq
    %v52 = vshrl.u32 %v51, 7
    %v53 = vsub.s32 %v50, %v52
    %v54 = vrot.slane %v40, %v53
    %v55 = vcombine.high %v47, %v47
    %v56 = vcombine.high %v54, %v54
    %v57 = vcombine.high %v37, %v37
    %v59 = vunpack.c.l.s4 1983009808
    %v60 = vunpack.c.0.s8 %v59
    %v61 = vlaneseq
    %v62 = vshrl.u32 %v61, 7
    %v63 = vsub.s32 %v60, %v62
    %v64 = vrot.slane %v37, %v63
    %v66 = vunpack.c.l.s4 1983009808
    %v67 = vunpack.c.0.s8 %v66
    %v68 = vlaneseq
    %v69 = vshrl.u32 %v68, 7
    %v70 = vsub.s32 %v67, %v69
    %v71 = vrot.slane %v57, %v70
    %v72 = vcombine.high %v64, %v64
    %v73 = vcombine.high %v71, %v71
    %vm82 = vcmask 1041408
    %v83 = vsel %vm82, %v47, 0.0
    %v84 = vsel %vm82, %v55, 0.0
    %v85 = vadd.f32 %v83, %v84
    %v86 = vsel %vm82, %v54, 0.0
    %v87 = vadd.f32 %v85, %v86
    %v88 = vsel %vm82, %v56, 0.0
    %v89 = vadd.f32 %v87, %v88
    %v90 = vsel %vm82, %v64, 0.0
    %v91 = vadd.f32 %v89, %v90
    %v92 = vsel %vm82, %v72, 0.0
    %v93 = vadd.f32 %v91, %v92
    %v94 = vsel %vm82, %v71, 0.0
    %v95 = vadd.f32 %v93, %v94
    %v96 = vsel %vm82, %v73, 0.0
    %v97 = vadd.f32 %v95, %v96
    %98 = vadd.xlane.f32.xlu0 %v97
    %v99 = vpop.xlane.xlu0 %98
    %v100 = vmul.f32 %v36, %v36
    %v101 = vmul.f32 %v37, %v37
    %v104 = vcombine.high %v100, %v100
    %v106 = vunpack.c.l.s4 1983009808
    %v107 = vunpack.c.0.s8 %v106
    %v108 = vlaneseq
    %v109 = vshrl.u32 %v108, 7
    %v110 = vsub.s32 %v107, %v109
    %v111 = vrot.slane %v100, %v110
    %v113 = vunpack.c.l.s4 1983009808
    %v114 = vunpack.c.0.s8 %v113
    %v115 = vlaneseq
    %v116 = vshrl.u32 %v115, 7
    %v117 = vsub.s32 %v114, %v116
    %v118 = vrot.slane %v104, %v117
    %v119 = vcombine.high %v111, %v111
    %v120 = vcombine.high %v118, %v118
    %v121 = vcombine.high %v101, %v101
    %v123 = vunpack.c.l.s4 1983009808
    %v124 = vunpack.c.0.s8 %v123
    %v125 = vlaneseq
    %v126 = vshrl.u32 %v125, 7
    %v127 = vsub.s32 %v124, %v126
    %v128 = vrot.slane %v101, %v127
    %v130 = vunpack.c.l.s4 1983009808
    %v131 = vunpack.c.0.s8 %v130
    %v132 = vlaneseq
    %v133 = vshrl.u32 %v132, 7
    %v134 = vsub.s32 %v131, %v133
    %v135 = vrot.slane %v121, %v134
    %v136 = vcombine.high %v128, %v128
    %v137 = vcombine.high %v135, %v135
    %v146 = vsel %vm82, %v111, 0.0
    %v147 = vsel %vm82, %v119, 0.0
    %v148 = vadd.f32 %v146, %v147
    %v149 = vsel %vm82, %v118, 0.0
    %v150 = vadd.f32 %v148, %v149
    %v151 = vsel %vm82, %v120, 0.0
    %v152 = vadd.f32 %v150, %v151
    %v153 = vsel %vm82, %v128, 0.0
    %v154 = vadd.f32 %v152, %v153
    %v155 = vsel %vm82, %v136, 0.0
    %v156 = vadd.f32 %v154, %v155
    %v157 = vsel %vm82, %v135, 0.0
    %v158 = vadd.f32 %v156, %v157
    %v159 = vsel %vm82, %v137, 0.0
    %v160 = vadd.f32 %v158, %v159
    %161 = vadd.xlane.f32.xlu0 %v160
    %v162 = vpop.xlane.xlu0 %161
    %v163 = vmul.f32 %v99, 0.0009765625
    %v164 = vmul.f32 %v162, 0.0009765625
    %v165 = vmul.f32 %v163, %v163
    %v166 = vsub.f32 %v164, %v165
    %v167 = vmax.f32 %v166, 0.0
    %v168 = vadd.f32 %v167, 1e-05
    %v169 = vrsqrt.pop %v168
    %v170 = vld [vmem:[#allocation5] ss:$2 sm:$0xff]
    %s171 = scalar_lea.vmem [#allocation5], 1
    %v172 = vld [vmem:[%s171] ss:$2 sm:$0xff]
    %v175 = vunpack.c.l.s4 269488144
    %v176 = vunpack.c.0.s8 %v175
    %v177 = vlaneseq
    %v178 = vshrl.u32 %v177, 7
    %v179 = vsub.s32 %v176, %v178
    %v180 = vrot.slane %v163, %v179
    %v182 = vsub.f32 %v36, %v180
    %v183 = vsub.f32 %v37, %v180
    %v186 = vunpack.c.l.s4 269488144
    %v187 = vunpack.c.0.s8 %v186
    %v188 = vlaneseq
    %v189 = vshrl.u32 %v188, 7
    %v190 = vsub.s32 %v187, %v189
    %v191 = vrot.slane %v169, %v190
    %v193 = vmul.f32 %v182, %v191
    %v194 = vmul.f32 %v183, %v191
    %v196 = vlaneseq
    %v197 = vshrl.u32 %v196, 7
    %v198 = vsub.s32 0, %v197
    %v199 = vrot.slane %v170, %v198
    %v200 = vlaneseq
    %v201 = vshrl.u32 %v200, 7
    %v202 = vsub.s32 1, %v201
    %v203 = vrot.slane %v170, %v202
    %v204 = vlaneseq
    %v205 = vshrl.u32 %v204, 7
    %v206 = vsub.s32 2, %v205
    %v207 = vrot.slane %v170, %v206
    %v208 = vlaneseq
    %v209 = vshrl.u32 %v208, 7
    %v210 = vsub.s32 3, %v209
    %v211 = vrot.slane %v170, %v210
    %v212 = vlaneseq
    %v213 = vshrl.u32 %v212, 7
    %v214 = vsub.s32 4, %v213
    %v215 = vrot.slane %v170, %v214
    %v216 = vlaneseq
    %v217 = vshrl.u32 %v216, 7
    %v218 = vsub.s32 5, %v217
    %v219 = vrot.slane %v170, %v218
    %v220 = vlaneseq
    %v221 = vshrl.u32 %v220, 7
    %v222 = vsub.s32 6, %v221
    %v223 = vrot.slane %v170, %v222
    %v224 = vlaneseq
    %v225 = vshrl.u32 %v224, 7
    %v226 = vsub.s32 7, %v225
    %v227 = vrot.slane %v170, %v226
    %v228 = vcombine.low %v199, %v203
    %v229 = vcombine.low %v207, %v211
    %v231 = vunpack.c.l.s4 1983009808
    %v232 = vunpack.c.0.s8 %v231
    %v233 = vlaneseq
    %v234 = vshrl.u32 %v233, 7
    %v235 = vsub.s32 %v232, %v234
    %v236 = vrot.slane %v228, %v235
    %v238 = vunpack.c.l.s4 1983009808
    %v239 = vunpack.c.0.s8 %v238
    %v240 = vlaneseq
    %v241 = vshrl.u32 %v240, 7
    %v242 = vsub.s32 %v239, %v241
    %v243 = vrot.slane %v229, %v242
    %v244 = vcombine.low %v236, %v243
    %v245 = vcombine.low %v215, %v219
    %v246 = vcombine.low %v223, %v227
    %v248 = vunpack.c.l.s4 1983009808
    %v249 = vunpack.c.0.s8 %v248
    %v250 = vlaneseq
    %v251 = vshrl.u32 %v250, 7
    %v252 = vsub.s32 %v249, %v251
    %v253 = vrot.slane %v245, %v252
    %v255 = vunpack.c.l.s4 1983009808
    %v256 = vunpack.c.0.s8 %v255
    %v257 = vlaneseq
    %v258 = vshrl.u32 %v257, 7
    %v259 = vsub.s32 %v256, %v258
    %v260 = vrot.slane %v246, %v259
    %v261 = vcombine.low %v253, %v260
    %v264 = vmul.f32 %v193, %v244
    %v265 = vmul.f32 %v194, %v261
    %v267 = vlaneseq
    %v268 = vshrl.u32 %v267, 7
    %v269 = vsub.s32 0, %v268
    %v270 = vrot.slane %v172, %v269
    %v271 = vlaneseq
    %v272 = vshrl.u32 %v271, 7
    %v273 = vsub.s32 1, %v272
    %v274 = vrot.slane %v172, %v273
    %v275 = vlaneseq
    %v276 = vshrl.u32 %v275, 7
    %v277 = vsub.s32 2, %v276
    %v278 = vrot.slane %v172, %v277
    %v279 = vlaneseq
    %v280 = vshrl.u32 %v279, 7
    %v281 = vsub.s32 3, %v280
    %v282 = vrot.slane %v172, %v281
    %v283 = vlaneseq
    %v284 = vshrl.u32 %v283, 7
    %v285 = vsub.s32 4, %v284
    %v286 = vrot.slane %v172, %v285
    %v287 = vlaneseq
    %v288 = vshrl.u32 %v287, 7
    %v289 = vsub.s32 5, %v288
    %v290 = vrot.slane %v172, %v289
    %v291 = vlaneseq
    %v292 = vshrl.u32 %v291, 7
    %v293 = vsub.s32 6, %v292
    %v294 = vrot.slane %v172, %v293
    %v295 = vlaneseq
    %v296 = vshrl.u32 %v295, 7
    %v297 = vsub.s32 7, %v296
    %v298 = vrot.slane %v172, %v297
    %v299 = vcombine.low %v270, %v274
    %v300 = vcombine.low %v278, %v282
    %v302 = vunpack.c.l.s4 1983009808
    %v303 = vunpack.c.0.s8 %v302
    %v304 = vlaneseq
    %v305 = vshrl.u32 %v304, 7
    %v306 = vsub.s32 %v303, %v305
    %v307 = vrot.slane %v299, %v306
    %v309 = vunpack.c.l.s4 1983009808
    %v310 = vunpack.c.0.s8 %v309
    %v311 = vlaneseq
    %v312 = vshrl.u32 %v311, 7
    %v313 = vsub.s32 %v310, %v312
    %v314 = vrot.slane %v300, %v313
    %v315 = vcombine.low %v307, %v314
    %v316 = vcombine.low %v286, %v290
    %v317 = vcombine.low %v294, %v298
    %v319 = vunpack.c.l.s4 1983009808
    %v320 = vunpack.c.0.s8 %v319
    %v321 = vlaneseq
    %v322 = vshrl.u32 %v321, 7
    %v323 = vsub.s32 %v320, %v322
    %v324 = vrot.slane %v316, %v323
    %v326 = vunpack.c.l.s4 1983009808
    %v327 = vunpack.c.0.s8 %v326
    %v328 = vlaneseq
    %v329 = vshrl.u32 %v328, 7
    %v330 = vsub.s32 %v327, %v329
    %v331 = vrot.slane %v317, %v330
    %v332 = vcombine.low %v324, %v331
    %v335 = vadd.f32 %v264, %v315
    %v336 = vadd.f32 %v265, %v332
    %337 = vst [vmem:[#allocation7] sm:$0xff] %v335
    %338 = vst [vmem:[#allocation7 + $0x8] sm:$0xff] %v336
    // Predicated region
    $region18: #{tpu_custom_call.1} parent=1 // pred_check
      _
    $region19: #{tpu_custom_call.1} parent=1 // pred_check_branch
      %340 = sbr.rel (0) target = $region21
    $region20: #{tpu_custom_call.1} parent=1 // pred_region
      %s342 = ssub.s32 256, 256
      %343 = vsyncadd [#allocation4], %s342
      %s345 = sshll.u32 [#allocation7], 4
      %s346 = int_to_ptr.vmem [resolvable:$true] %s345
      %348 = dma.vmem_to_hbm [thread:$0]  %s346, 256, %s2, [#allocation4]
    $region21: #{tpu_custom_call.1} parent=1 // pred_fallthru
      _
    // Predicated region
    $region22: #{tpu_custom_call.1} parent=1 // pred_check
      _
    $region23: #{tpu_custom_call.1} parent=1 // pred_check_branch
      %350 = sbr.rel (0) target = $region25
    $region24: #{tpu_custom_call.1} parent=1 // pred_region
      %351 = dma.done [#allocation4], 256
    $region25: #{tpu_custom_call.1} parent=1 // pred_fallthru
      _
    %352 = vsyncpa [#allocation3], 1
    %353 = vsyncpa [#allocation6], 1
    %354 = vsyncpa [#allocation4], 1

</llo_original>
